<compile_context>
chip_gen: v6e
topology: v6e:2x2x1
jax: 0.10.0
libtpu: 0.0.40
codegen_flags: <defaults>
</compile_context>

<pallas_src>
import functools

import numpy as np
import jax
import jax.numpy as jnp
from jax import lax
from jax.experimental import pallas as pl
from jax.experimental.pallas import tpu as pltpu

_LANES = 128
_SUBLANES_F32 = 8
_INV_SQRT_2PI = float(1.0 / np.sqrt(2.0 * np.pi))
_INV_SQRT_2 = float(1.0 / np.sqrt(2.0))
_TINY = float(np.finfo(np.float32).tiny)


def _adf_leaky_relu_math(m, v, ns):
    """Shared f32 math for kernel, jnp fallback, and ragged tail.

    Algebraically identical to the PyTorch module:
      out_mean = (1-ns)*mean_r + ns*m
      out_var  = (m^2+v)*(ns^2 + (1-ns^2)*cdf) + (1-ns^2)*m*stddev*pdf - out_mean^2
    """
    v = jnp.maximum(v, jnp.float32(_TINY))        # avoid 0 * inf = NaN at v == 0
    inv_std = lax.rsqrt(v)                        # one EUP op instead of sqrt+div
    div = m * inv_std
    stddev = v * inv_std

    pdf = jnp.exp(-0.5 * (div * div)) * _INV_SQRT_2PI
    # TODO(synk): if v7x bundle dumps show the VALU slot saturated on erf's
    # polynomial, swap in a tanh-based Phi approximation (EUP) where tolerance allows.
    cdf = 0.5 + 0.5 * lax.erf(div * _INV_SQRT_2)

    stddev_pdf = stddev * pdf
    mean_stddev_pdf = m * stddev_pdf
    squared_mean_variance = m * m + v
    mean_r = m * cdf + stddev_pdf                 # E[max(x, 0)]

    one_m_ns2 = 1.0 - ns * ns
    out_mean = (1.0 - ns) * mean_r + ns * m
    w = ns * ns + one_m_ns2 * cdf                 # == cdf + ns^2 * (1 - cdf)
    out_var = (squared_mean_variance * w
               + one_m_ns2 * mean_stddev_pdf
               - out_mean * out_mean)
    return out_mean, out_var


def _adf_leaky_relu_kernel(mean_ref, var_ref, out_mean_ref, out_var_ref,
                           *, negative_slope):
    m = mean_ref[...].astype(jnp.float32)
    v = var_ref[...].astype(jnp.float32)
    out_mean, out_var = _adf_leaky_relu_math(m, v, jnp.float32(negative_slope))
    out_mean_ref[...] = out_mean.astype(out_mean_ref.dtype)
    out_var_ref[...] = out_var.astype(out_var_ref.dtype)


def _adf_leaky_relu_jnp(m, v, negative_slope):
    """Pure-jnp path (tiny tensors and the <128-element ragged tail)."""
    om, ov = _adf_leaky_relu_math(m.astype(jnp.float32), v.astype(jnp.float32),
                                  jnp.float32(negative_slope))
    return om.astype(m.dtype), ov.astype(v.dtype)


def _choose_block_rows(rows, max_block_rows, sublanes):
    """Sublane-aligned block rows, VMEM-bounded, targeting >=4 grid steps
    (>=2 per TensorCore on dual-TC chips) so DMA/compute pipelining is live."""
    if rows <= sublanes:
        return rows                                  # single block == full dims
    quarter = -(-rows // 4)                          # ceil(rows / 4)
    quarter = -(-quarter // sublanes) * sublanes     # round up to sublane multiple
    return max(sublanes, min(max_block_rows, quarter))


def adf_leaky_relu(features_mean, features_variance, negative_slope=0.01,
                   keep_variance_fn=None, *, min_pallas_elements=1 << 16):
    assert features_mean.shape == features_variance.shape
    orig_shape = features_mean.shape
    dtype = features_mean.dtype
    n = int(np.prod(orig_shape)) if len(orig_shape) else 1
    ns = float(negative_slope)

    if n < max(min_pallas_elements, _LANES):
        # Tiny tensors: fixed pallas_call / Mosaic launch overhead dominates.
        out_mean, out_var = _adf_leaky_relu_jnp(features_mean, features_variance, ns)
    else:
        itemsize = jnp.dtype(dtype).itemsize
        sublanes = max(_SUBLANES_F32, 32 // itemsize)   # 8 f32 / 16 bf16 / 32 int8

        # Auto-size blocks from the chip's VMEM capacity (64 MiB/TC on v7x,
        # 128 MiB on v5e/v6e). 2 in + 2 out, double-buffered => 8 blocks live.
        try:
            vmem_cap = int(pltpu.get_tpu_info().vmem_capacity_bytes)
        except Exception:  # interpret mode / unknown chip
            vmem_cap = 64 << 20
        vmem_limit = min(vmem_cap, 40 << 20)
        max_block_bytes = min(4 << 20, vmem_limit // 10)
        max_block_rows = max(sublanes, max_block_bytes // (_LANES * itemsize))

        flat_m = features_mean.reshape(-1)
        flat_v = features_variance.reshape(-1)
        n_main = (n // _LANES) * _LANES
        rows = n_main // _LANES

        block_rows = _choose_block_rows(rows, max_block_rows, sublanes)
        grid = (pl.cdiv(rows, block_rows),)

        if n_main != n:
            m2d = flat_m[:n_main].reshape(rows, _LANES)
            v2d = flat_v[:n_main].reshape(rows, _LANES)
        else:
            m2d = flat_m.reshape(rows, _LANES)
            v2d = flat_v.reshape(rows, _LANES)

        # TODO(synk): if negative_slope varies at runtime, pass it via an SMEM
        # scalar instead of baking it (avoids a Mosaic recompile per value).
        # TODO(synk): when callers donate inputs, add input_output_aliases={0:0,1:1}
        # to halve HBM footprint.
        kernel = functools.partial(_adf_leaky_relu_kernel, negative_slope=ns)
        spec = pl.BlockSpec((block_rows, _LANES), lambda i: (i, 0))

        out_mean2d, out_var2d = pl.pallas_call(
            kernel,
            out_shape=(
                jax.ShapeDtypeStruct((rows, _LANES), dtype),
                jax.ShapeDtypeStruct((rows, _LANES), dtype),
            ),
            grid_spec=pltpu.PrefetchScalarGridSpec(
                num_scalar_prefetch=0,
                grid=grid,
                in_specs=[spec, spec],
                out_specs=[spec, spec],
            ),
            compiler_params=pltpu.CompilerParams(
                dimension_semantics=("parallel",),
                vmem_limit_bytes=vmem_limit),
        )(m2d, v2d)

        if n_main != n:
            # Ragged tail (< 128 elements) in plain jnp; no full-tensor pad/unpad.
            tail_mean, tail_var = _adf_leaky_relu_jnp(flat_m[n_main:],
                                                      flat_v[n_main:], ns)
            out_mean = jnp.concatenate(
                [out_mean2d.reshape(-1), tail_mean]).reshape(orig_shape)
            out_var = jnp.concatenate(
                [out_var2d.reshape(-1), tail_var]).reshape(orig_shape)
        else:
            out_mean = out_mean2d.reshape(orig_shape)
            out_var = out_var2d.reshape(orig_shape)

    if keep_variance_fn is not None:
        out_var = keep_variance_fn(out_var)
    return out_mean, out_var


def _reference(features_mean, features_variance, negative_slope=0.01):
    # Pure-JAX reference mirroring the PyTorch module exactly.
    stddev = jnp.sqrt(features_variance)
    div = features_mean / stddev
    pdf = jnp.exp(-0.5 * div ** 2) / np.sqrt(2.0 * np.pi)
    cdf = 0.5 * (1.0 + lax.erf(div / np.sqrt(2.0)))
    negative_cdf = 1.0 - cdf
    mu_cdf = features_mean * cdf
    stddev_pdf = stddev * pdf
    squared_mean_variance = features_mean ** 2 + features_variance
    mean_stddev_pdf = features_mean * stddev_pdf
    mean_r = mu_cdf + stddev_pdf
    variance_r = squared_mean_variance * cdf + mean_stddev_pdf - mean_r ** 2
    mean_n = -features_mean * negative_cdf + stddev_pdf
    variance_n = squared_mean_variance * negative_cdf - mean_stddev_pdf - mean_n ** 2
    covxy = -mean_r * mean_n
    out_mean = mean_r - negative_slope * mean_n
    out_var = (variance_r + negative_slope ** 2 * variance_n
               - 2.0 * negative_slope * covxy)
    return out_mean, out_var


if __name__ == "__main__":
    key = jax.random.PRNGKey(0)
    k1, k2, k3, k4 = jax.random.split(key, 4)

    # Primary test: NCHW (2,4,16,16) — 2048 elems, lane-aligned.
    # min_pallas_elements=0 forces the Pallas path (default would route these
    # small test tensors to the jnp fast path).
    shape = (2, 4, 16, 16)
    features_mean = jax.random.normal(k1, shape, dtype=jnp.float32)
    features_variance = jax.nn.softplus(
        jax.random.normal(k2, shape, dtype=jnp.float32)) + 1e-3

    out_mean, out_var = adf_leaky_relu(features_mean, features_variance,
                                       negative_slope=0.01,
                                       min_pallas_elements=0)
    jax.block_until_ready((out_mean, out_var))

    ref_mean, ref_var = _reference(features_mean, features_variance, 0.01)
    assert out_mean.shape == shape and out_var.shape == shape
    np.testing.assert_allclose(np.asarray(out_mean), np.asarray(ref_mean),
                               rtol=1e-5, atol=1e-5)
    np.testing.assert_allclose(np.asarray(out_var), np.asarray(ref_var),
                               rtol=1e-5, atol=1e-5)

    # Secondary test: ragged, non-128-multiple element count exercises the
    # aligned-prefix (Pallas) + tail (jnp) path.
    rshape = (3, 5, 7, 11)  # 1155 = 9*128 + 3
    rm = jax.random.normal(k3, rshape, dtype=jnp.float32)
    rv = jax.nn.softplus(jax.random.normal(k4, rshape, dtype=jnp.float32)) + 1e-3
    om, ov = adf_leaky_relu(rm, rv, negative_slope=0.2, min_pallas_elements=0)
    jax.block_until_ready((om, ov))
    rom, rov = _reference(rm, rv, 0.2)
    np.testing.assert_allclose(np.asarray(om), np.asarray(rom),
                               rtol=1e-5, atol=1e-5)
    np.testing.assert_allclose(np.asarray(ov), np.asarray(rov),
                               rtol=1e-5, atol=1e-5)

    # Default small-tensor jnp fast path matches as well.
    fm2, fv2 = adf_leaky_relu(features_mean, features_variance,
                              negative_slope=0.01)
    jax.block_until_ready((fm2, fv2))
    np.testing.assert_allclose(np.asarray(fm2), np.asarray(ref_mean),
                               rtol=1e-5, atol=1e-5)
    np.testing.assert_allclose(np.asarray(fv2), np.asarray(ref_var),
                               rtol=1e-5, atol=1e-5)

    print("KERNEL_OK")
</pallas_src>

<mosaic_0001>
module attributes {stable_mosaic.version = 11 : i64} {
  func.func @_adf_leaky_relu_kernel(%arg0: i32, %arg1: memref<8x128xf32, #tpu.memory_space<vmem>>, %arg2: memref<8x128xf32, #tpu.memory_space<vmem>>, %arg3: memref<8x128xf32, #tpu.memory_space<vmem>>, %arg4: memref<8x128xf32, #tpu.memory_space<vmem>>) attributes {dimension_semantics = [#tpu.dimension_semantics<parallel>], iteration_bounds = array<i64: 2>, scalar_prefetch = 0 : i64, scratch_operands = 0 : i64, tpu.core_type = #tpu.core_type<tc>, window_params = [{transform_indices = @transform_0, window_bounds = array<i64: 8, 128>}, {transform_indices = @transform_1, window_bounds = array<i64: 8, 128>}, {transform_indices = @transform_2, window_bounds = array<i64: 8, 128>}, {transform_indices = @transform_3, window_bounds = array<i64: 8, 128>}]} {
    %c0 = arith.constant 0 : index
    %c0_0 = arith.constant 0 : index
    %0 = vector.load %arg1[%c0, %c0_0] : memref<8x128xf32, #tpu.memory_space<vmem>>, vector<8x128xf32>
    %c0_1 = arith.constant 0 : index
    %c0_2 = arith.constant 0 : index
    %1 = vector.load %arg2[%c0_1, %c0_2] : memref<8x128xf32, #tpu.memory_space<vmem>>, vector<8x128xf32>
    %cst = arith.constant 1.17549435E-38 : f32
    %2 = vector.broadcast %cst : f32 to vector<8x128xf32>
    %3 = arith.maximumf %1, %2 : vector<8x128xf32>
    %4 = math.rsqrt %3 : vector<8x128xf32>
    %5 = arith.mulf %0, %4 : vector<8x128xf32>
    %6 = arith.mulf %3, %4 : vector<8x128xf32>
    %7 = arith.mulf %5, %5 : vector<8x128xf32>
    %cst_3 = arith.constant -5.000000e-01 : f32
    %8 = vector.broadcast %cst_3 : f32 to vector<8x128xf32>
    %9 = arith.mulf %8, %7 : vector<8x128xf32>
    %10 = math.exp %9 : vector<8x128xf32>
    %cst_4 = arith.constant 0.398942292 : f32
    %11 = vector.broadcast %cst_4 : f32 to vector<8x128xf32>
    %12 = arith.mulf %10, %11 : vector<8x128xf32>
    %cst_5 = arith.constant 0.707106769 : f32
    %13 = vector.broadcast %cst_5 : f32 to vector<8x128xf32>
    %14 = arith.mulf %5, %13 : vector<8x128xf32>
    %15 = math.erf %14 : vector<8x128xf32>
    %cst_6 = arith.constant 5.000000e-01 : f32
    %16 = vector.broadcast %cst_6 : f32 to vector<8x128xf32>
    %17 = arith.mulf %16, %15 : vector<8x128xf32>
    %cst_7 = arith.constant 5.000000e-01 : f32
    %18 = vector.broadcast %cst_7 : f32 to vector<8x128xf32>
    %19 = arith.addf %18, %17 : vector<8x128xf32>
    %20 = arith.mulf %6, %12 : vector<8x128xf32>
    %21 = arith.mulf %0, %20 : vector<8x128xf32>
    %22 = arith.mulf %0, %0 : vector<8x128xf32>
    %23 = arith.addf %22, %3 : vector<8x128xf32>
    %24 = arith.mulf %0, %19 : vector<8x128xf32>
    %25 = arith.addf %24, %20 : vector<8x128xf32>
    %cst_8 = arith.constant 0.00999999977 : f32
    %cst_9 = arith.constant 0.00999999977 : f32
    %26 = arith.mulf %cst_8, %cst_9 : f32
    %cst_10 = arith.constant 1.000000e+00 : f32
    %27 = arith.subf %cst_10, %26 : f32
    %cst_11 = arith.constant 1.000000e+00 : f32
    %cst_12 = arith.constant 0.00999999977 : f32
    %28 = arith.subf %cst_11, %cst_12 : f32
    %29 = vector.broadcast %28 : f32 to vector<8x128xf32>
    %30 = arith.mulf %29, %25 : vector<8x128xf32>
    %cst_13 = arith.constant 0.00999999977 : f32
    %31 = vector.broadcast %cst_13 : f32 to vector<8x128xf32>
    %32 = arith.mulf %31, %0 : vector<8x128xf32>
    %33 = arith.addf %30, %32 : vector<8x128xf32>
    %cst_14 = arith.constant 0.00999999977 : f32
    %cst_15 = arith.constant 0.00999999977 : f32
    %34 = arith.mulf %cst_14, %cst_15 : f32
    %35 = vector.broadcast %27 : f32 to vector<8x128xf32>
    %36 = arith.mulf %35, %19 : vector<8x128xf32>
    %37 = vector.broadcast %34 : f32 to vector<8x128xf32>
    %38 = arith.addf %37, %36 : vector<8x128xf32>
    %39 = arith.mulf %23, %38 : vector<8x128xf32>
    %40 = vector.broadcast %27 : f32 to vector<8x128xf32>
    %41 = arith.mulf %40, %21 : vector<8x128xf32>
    %42 = arith.addf %39, %41 : vector<8x128xf32>
    %43 = arith.mulf %33, %33 : vector<8x128xf32>
    %44 = arith.subf %42, %43 : vector<8x128xf32>
    %c0_16 = arith.constant 0 : index
    %c0_17 = arith.constant 0 : index
    %45 = vector.load %arg3[%c0_16, %c0_17] : memref<8x128xf32, #tpu.memory_space<vmem>>, vector<8x128xf32>
    tpu.vector_store %arg3[%c0_16, %c0_17], %33 {strides = array<i32>} : memref<8x128xf32, #tpu.memory_space<vmem>>, vector<8x128xf32>,
    %c0_18 = arith.constant 0 : index
    %c0_19 = arith.constant 0 : index
    %46 = vector.load %arg4[%c0_18, %c0_19] : memref<8x128xf32, #tpu.memory_space<vmem>>, vector<8x128xf32>
    tpu.vector_store %arg4[%c0_18, %c0_19], %44 {strides = array<i32>} : memref<8x128xf32, #tpu.memory_space<vmem>>, vector<8x128xf32>,
    return
  }
  func.func @transform_0(%arg0: i32) -> (i32, i32) {
    %c0_i32 = arith.constant 0 : i32
    %c0_i32_0 = arith.constant 0 : i32
    return %arg0, %c0_i32 : i32, i32
  }
  func.func @transform_1(%arg0: i32) -> (i32, i32) {
    %c0_i32 = arith.constant 0 : i32
    %c0_i32_0 = arith.constant 0 : i32
    return %arg0, %c0_i32 : i32, i32
  }
  func.func @transform_2(%arg0: i32) -> (i32, i32) {
    %c0_i32 = arith.constant 0 : i32
    %c0_i32_0 = arith.constant 0 : i32
    return %arg0, %c0_i32 : i32, i32
  }
  func.func @transform_3(%arg0: i32) -> (i32, i32) {
    %c0_i32 = arith.constant 0 : i32
    %c0_i32_0 = arith.constant 0 : i32
    return %arg0, %c0_i32 : i32, i32
  }
}

</mosaic_0001>

<llo_original>
// kernel: tpu_custom_call.1
$region0: #{tpu_custom_call.1}
  #allocation0 [shape = 'u32[]', space=smem, size = 0x4, offset = 0x4, fixed_abs, tag = 'smem constant byte address 0x4 - core index']
  #allocation1 [shape = 'u32[144,128]{1,0:T(1,128)}', space=vmem, size = 0x12000, scoped, tag = 'internal scratch']
  %s0 = inlined_call_operand.hbm [shape: f32[16,128], index: 0, kind: input, shape index: {}]
  %s1 = inlined_call_operand.hbm [shape: f32[16,128], index: 1, kind: input, shape index: {}]
  %s2 = inlined_call_operand.hbm [shape: f32[16,128], index: 2, kind: output, shape index: {0}]
  %s3 = inlined_call_operand.hbm [shape: f32[16,128], index: 3, kind: output, shape index: {1}]
  %4 = xla_tuple %s2, %s3
  %s5 = sld [smem:[#allocation0]]
  $region57: #{tpu_custom_call.1} parent=0
    _
  %s7 = ssub.s32 1, %s5
  %s8 = scalar_select 0, %s7, %s5
  $region1: #{tpu_custom_call.1} parent=0
    #allocation2 [shape = 'u8[8192]{0}', space=vmem, size = 0x2000, scoped, tag = 'input window, operand 0']
    #allocation3 [shape = 's32[2]{0}', space=sflag, size = 0x8, scoped, tag = 'scoped memory for tpu_custom_call.1']
    #allocation4 [shape = 's32[2]{0}', space=sflag, size = 0x8, scoped, tag = 'scoped memory for tpu_custom_call.1']
    #allocation5 [shape = 'u8[8192]{0}', space=vmem, size = 0x2000, scoped, tag = 'input window, operand 1']
    #allocation6 [shape = 's32[2]{0}', space=sflag, size = 0x8, scoped, tag = 'scoped memory for tpu_custom_call.1']
    #allocation7 [shape = 'u8[8192]{0}', space=vmem, size = 0x2000, scoped, tag = 'output window, operand 0']
    #allocation8 [shape = 'u8[8192]{0}', space=vmem, size = 0x2000, scoped, tag = 'output window, operand 1']
    #allocation9 [shape = 's32[2]{0}', space=sflag, size = 0x8, scoped, tag = 'scoped memory for tpu_custom_call.1']
    %9 = vsyncpa [#allocation3], 0
    %s10 = scalar_lea.sflag [#allocation3], 1
    %11 = vsyncpa %s10, 0
    %12 = vsyncpa [#allocation6], 0
    %s13 = scalar_lea.sflag [#allocation6], 1
    %14 = vsyncpa %s13, 0
    %15 = vsyncpa [#allocation4], 0
    %s16 = scalar_lea.sflag [#allocation4], 1
    %17 = vsyncpa %s16, 0
    %18 = vsyncpa [#allocation9], 0
    %s19 = scalar_lea.sflag [#allocation9], 1
    %20 = vsyncpa %s19, 0
    loop: start=0, step=1, limit=4
    $region2: #{tpu_custom_call.1} parent=1 // loop_pre_header
      _
    $region3: #{tpu_custom_call.1} parent=1 // loop_header
      %s22 = sphi 0, %s26
      %p23 = scmp.ge.s32.totalorder %s22, 4
      %s32 = sphi 0, %s34
      %s35 = sphi 0, %s32
      %s36 = sphi 0, %s35
      %s52 = sphi 0, %s36
      %s58 = sphi 0, %s60
      %s61 = sphi 0, %s58
      %s62 = sphi 0, %s61
      %s78 = sphi 0, %s62
      %s84 = sphi 0, %s86
      %s87 = sphi 0, %s84
      %s88 = sphi 0, %s87
      %s104 = sphi 0, %s88
      %s110 = sphi 0, %s112
      %s113 = sphi 0, %s110
      %s114 = sphi 0, %s113
      %s130 = sphi 0, %s114
    $region4: #{tpu_custom_call.1} parent=1 // loop_header_branch
      %25 = sbr.rel (%p23) target = $region8
    $region5: #{tpu_custom_call.1} parent=1 // loop_body
      %s27 = ssub.s32 %s22, 1
      %s28 = ssub.s32 %s22, 2
      %s29 = sadd.s32 %s22, 1
      %s30 = ssub.s32 %s22, %s29
      %p31 = scmp.eq.s32.totalorder %s30, 0
      %s33 = sadd.s32 %s32, 1
      %s34 = scalar_select %p31, %s32, %s33
      %p37 = pneg %p31
      %p38 = scmp.eq.s32.totalorder %s22, 1
      %p39 = por %p37, %p38
      %p40 = scmp.ne.s32.totalorder %s32, %s35
      %p41 = scmp.eq.s32.totalorder %s22, 0
      %p42 = por %p40, %p41
      %p43 = scmp.ne.s32.totalorder %s32, %s35
      %p44 = scmp.eq.s32.totalorder %s27, 1
      %p45 = por %p43, %p44
      %p46 = scmp.ne.s32.totalorder %s35, %s36
      %p47 = scmp.eq.s32.totalorder %s27, 0
      %p48 = por %p46, %p47
      %p49 = scmp.ne.s32.totalorder %s35, %s36
      %p50 = scmp.eq.s32.totalorder %s28, 1
      %p51 = por %p49, %p50
      %p53 = scmp.ne.s32.totalorder %s36, %s52
      %p54 = scmp.eq.s32.totalorder %s28, 0
      %p55 = por %p53, %p54
      %s56 = ssub.s32 %s22, %s29
      %p57 = scmp.eq.s32.totalorder %s56, 0
      %s59 = sadd.s32 %s58, 1
      %s60 = scalar_select %p57, %s58, %s59
      %p63 = pneg %p57
      %p64 = scmp.eq.s32.totalorder %s22, 1
      %p65 = por %p63, %p64
      %p66 = scmp.ne.s32.totalorder %s58, %s61
      %p67 = scmp.eq.s32.totalorder %s22, 0
      %p68 = por %p66, %p67
      %p69 = scmp.ne.s32.totalorder %s58, %s61
      %p70 = scmp.eq.s32.totalorder %s27, 1
      %p71 = por %p69, %p70
      %p72 = scmp.ne.s32.totalorder %s61, %s62
      %p73 = scmp.eq.s32.totalorder %s27, 0
      %p74 = por %p72, %p73
      %p75 = scmp.ne.s32.totalorder %s61, %s62
      %p76 = scmp.eq.s32.totalorder %s28, 1
      %p77 = por %p75, %p76
      %p79 = scmp.ne.s32.totalorder %s62, %s78
      %p80 = scmp.eq.s32.totalorder %s28, 0
      %p81 = por %p79, %p80
      %s82 = ssub.s32 %s22, %s29
      %p83 = scmp.eq.s32.totalorder %s82, 0
      %s85 = sadd.s32 %s84, 1
      %s86 = scalar_select %p83, %s84, %s85
      %p89 = pneg %p83
      %p90 = scmp.eq.s32.totalorder %s22, 1
      %p91 = por %p89, %p90
      %p92 = scmp.ne.s32.totalorder %s84, %s87
      %p93 = scmp.eq.s32.totalorder %s22, 0
      %p94 = por %p92, %p93
      %p95 = scmp.ne.s32.totalorder %s84, %s87
      %p96 = scmp.eq.s32.totalorder %s27, 1
      %p97 = por %p95, %p96
      %p98 = scmp.ne.s32.totalorder %s87, %s88
      %p99 = scmp.eq.s32.totalorder %s27, 0
      %p100 = por %p98, %p99
      %p101 = scmp.ne.s32.totalorder %s87, %s88
      %p102 = scmp.eq.s32.totalorder %s28, 1
      %p103 = por %p101, %p102
      %p105 = scmp.ne.s32.totalorder %s88, %s104
      %p106 = scmp.eq.s32.totalorder %s28, 0
      %p107 = por %p105, %p106
      %s108 = ssub.s32 %s22, %s29
      %p109 = scmp.eq.s32.totalorder %s108, 0
      %s111 = sadd.s32 %s110, 1
      %s112 = scalar_select %p109, %s110, %s111
      %p115 = pneg %p109
      %p116 = scmp.eq.s32.totalorder %s22, 1
      %p117 = por %p115, %p116
      %p118 = scmp.ne.s32.totalorder %s110, %s113
      %p119 = scmp.eq.s32.totalorder %s22, 0
      %p120 = por %p118, %p119
      %p121 = scmp.ne.s32.totalorder %s110, %s113
      %p122 = scmp.eq.s32.totalorder %s27, 1
      %p123 = por %p121, %p122
      %p124 = scmp.ne.s32.totalorder %s113, %s114
      %p125 = scmp.eq.s32.totalorder %s27, 0
      %p126 = por %p124, %p125
      %p127 = scmp.ne.s32.totalorder %s113, %s114
      %p128 = scmp.eq.s32.totalorder %s28, 1
      %p129 = por %p127, %p128
      %p131 = scmp.ne.s32.totalorder %s114, %s130
      %p132 = scmp.eq.s32.totalorder %s28, 0
      %p133 = por %p131, %p132
      %p134 = scmp.le.s32.totalorder 1, %s22
      %p135 = scmp.lt.s32.totalorder %s22, 3
      %p136 = pnand %p134, %p135
      %p137 = pneg %p136
      // Predicated region
      $region9: #{tpu_custom_call.1} parent=5 // pred_check
        _
      $region10: #{tpu_custom_call.1} parent=5 // pred_check_branch
        %139 = sbr.rel (%p136) target = $region12
      $region11: #{tpu_custom_call.1} parent=5 // pred_region
        %s140 = ssub.s32 %s22, 1
      $region12: #{tpu_custom_call.1} parent=5 // pred_fallthru
        _
      %p141 = scmp.lt.s32.totalorder %s22, 2
      // Predicated region
      $region13: #{tpu_custom_call.1} parent=5 // pred_check
        %p142 = pneg %p141
      $region14: #{tpu_custom_call.1} parent=5 // pred_check_branch
        %144 = sbr.rel (%p142) target = $region16
      $region15: #{tpu_custom_call.1} parent=5 // pred_region
        // Predicated region
        $region17: #{tpu_custom_call.1} parent=15 // pred_check
          %p145 = pneg %p42
        $region18: #{tpu_custom_call.1} parent=15 // pred_check_branch
          %147 = sbr.rel (%p145) target = $region20
        $region19: #{tpu_custom_call.1} parent=15 // pred_region
          %s148 = sand.u32 %s32, 1
          %s149 = scalar_lea.sflag [#allocation3], %s148
          %s150 = sand.u32 %s32, 1
          %s151 = smul.addr %s150, 8
          %s152 = scalar_lea.vmem [#allocation2], %s151
          %s154 = ssub.s32 128, 128
          %155 = vsyncadd %s149, %s154
          %s156 = smul.addr %s22, 128
          %s157 = scalar_lea.hbm %s0, %s156
          %s159 = sshll.u32 %s152, 4
          %s160 = int_to_ptr.vmem [resolvable:$true] %s159
          %162 = dma.hbm_to_vmem [thread:$0]  %s157, 128, %s160, %s149
        $region20: #{tpu_custom_call.1} parent=15 // pred_fallthru
          _
        // Predicated region
        $region21: #{tpu_custom_call.1} parent=15 // pred_check
          %p163 = pneg %p68
        $region22: #{tpu_custom_call.1} parent=15 // pred_check_branch
          %165 = sbr.rel (%p163) target = $region24
        $region23: #{tpu_custom_call.1} parent=15 // pred_region
          %s166 = sand.u32 %s58, 1
          %s167 = scalar_lea.sflag [#allocation6], %s166
          %s168 = sand.u32 %s58, 1
          %s169 = smul.addr %s168, 8
          %s170 = scalar_lea.vmem [#allocation5], %s169
          %s172 = ssub.s32 128, 128
          %173 = vsyncadd %s167, %s172
          %s174 = smul.addr %s22, 128
          %s175 = scalar_lea.hbm %s1, %s174
          %s177 = sshll.u32 %s170, 4
          %s178 = int_to_ptr.vmem [resolvable:$true] %s177
          %180 = dma.hbm_to_vmem [thread:$0]  %s175, 128, %s178, %s167
        $region24: #{tpu_custom_call.1} parent=15 // pred_fallthru
          _
      $region16: #{tpu_custom_call.1} parent=5 // pred_fallthru
        _
      %p181 = scmp.le.s32.totalorder 1, %s22
      %p182 = scmp.lt.s32.totalorder %s22, 3
      %p183 = pnand %p181, %p182
      %p184 = pneg %p183
      // Predicated region
      $region25: #{tpu_custom_call.1} parent=5 // pred_check
        _
      $region26: #{tpu_custom_call.1} parent=5 // pred_check_branch
        %186 = sbr.rel (%p183) target = $region28
      $region27: #{tpu_custom_call.1} parent=5 // pred_region
        %s187 = ssub.s32 %s22, 1
        %s188 = sand.u32 %s35, 1
        %s189 = scalar_lea.sflag [#allocation3], %s188
        %s190 = sand.u32 %s35, 1
        %s191 = smul.addr %s190, 8
        %s192 = scalar_lea.vmem [#allocation2], %s191
        // Predicated region
        $region29: #{tpu_custom_call.1} parent=27 // pred_check
          %p193 = pneg %p48
        $region30: #{tpu_custom_call.1} parent=27 // pred_check_branch
          %195 = sbr.rel (%p193) target = $region32
        $region31: #{tpu_custom_call.1} parent=27 // pred_region
          %196 = dma.done %s189, 128
        $region32: #{tpu_custom_call.1} parent=27 // pred_fallthru
          _
        %s197 = sand.u32 %s61, 1
        %s198 = scalar_lea.sflag [#allocation6], %s197
        %s199 = sand.u32 %s61, 1
        %s200 = smul.addr %s199, 8
        %s201 = scalar_lea.vmem [#allocation5], %s200
        // Predicated region
        $region33: #{tpu_custom_call.1} parent=27 // pred_check
          %p202 = pneg %p74
        $region34: #{tpu_custom_call.1} parent=27 // pred_check_branch
          %204 = sbr.rel (%p202) target = $region36
        $region35: #{tpu_custom_call.1} parent=27 // pred_region
          %205 = dma.done %s198, 128
        $region36: #{tpu_custom_call.1} parent=27 // pred_fallthru
          _
        %s206 = sand.u32 %s35, 1
        %s207 = scalar_lea.sflag [#allocation3], %s206
        %s208 = sand.u32 %s35, 1
        %s209 = smul.addr %s208, 8
        %s210 = scalar_lea.vmem [#allocation2], %s209
        %p211 = pneg %p48
        %p212 = pneg %p45
        %s213 = sand.u32 %s61, 1
        %s214 = scalar_lea.sflag [#allocation6], %s213
        %s215 = sand.u32 %s61, 1
        %s216 = smul.addr %s215, 8
        %s217 = scalar_lea.vmem [#allocation5], %s216
        %p218 = pneg %p74
        %p219 = pneg %p71
        %p220 = pneg %p100
        %p221 = pneg %p97
        %s222 = sand.u32 %s87, 1
        %s223 = scalar_lea.sflag [#allocation4], %s222
        %s224 = sand.u32 %s87, 1
        %s225 = smul.addr %s224, 8
        %s226 = scalar_lea.vmem [#allocation7], %s225
        %p227 = pneg %p126
        %p228 = pneg %p123
        %s229 = sand.u32 %s113, 1
        %s230 = scalar_lea.sflag [#allocation9], %s229
        %s231 = sand.u32 %s113, 1
        %s232 = smul.addr %s231, 8
        %s233 = scalar_lea.vmem [#allocation8], %s232
        %v234 = vld [vmem:[%s192] sm:$0xff]
        %v235 = vld [vmem:[%s201] sm:$0xff]
        %v236 = vmax.f32 %v235, 1.1754944e-38
        %v237 = vrsqrt.pop %v236
        %v238 = vmul.f32 %v234, %v237
        %v239 = vmul.f32 %v236, %v237
        %v240 = vmul.f32 %v238, %v238
        %v241 = vmul.f32 %v240, -0.5
        %v242 = vmul.f32 %v241, 1.442695
        %v243 = vpow.pop %v242
        %v244 = vmul.f32 %v243, 0.3989423
        %v245 = vmul.f32 %v238, 0.70710677
        %v246 = verf.f32.pop %v245
        %v247 = vmul.f32 %v246, 0.5
        %v248 = vadd.f32 %v247, 0.5
        %v249 = vmul.f32 %v239, %v244
        %v250 = vmul.f32 %v234, %v249
        %v251 = vmul.f32 %v234, %v234
        %v252 = vadd.f32 %v251, %v236
        %v253 = vmul.f32 %v234, %v248
        %v254 = vadd.f32 %v253, %v249
        %v255 = vmul.f32 %v254, 0.99
        %v256 = vmul.f32 %v234, 0.01
        %v257 = vadd.f32 %v255, %v256
        %v258 = vmul.f32 %v248, 0.9999
        %v259 = vadd.f32 %v258, 0.0001
        %v260 = vmul.f32 %v252, %v259
        %v261 = vmul.f32 %v250, 0.9999
        %v262 = vadd.f32 %v260, %v261
        %v263 = vmul.f32 %v257, %v257
        %v264 = vsub.f32 %v262, %v263
        %265 = vst [vmem:[%s226] sm:$0xff] %v257
        %266 = vst [vmem:[%s233] sm:$0xff] %v264
        %s267 = sand.u32 %s87, 1
        %s268 = scalar_lea.sflag [#allocation4], %s267
        %s269 = sand.u32 %s87, 1
        %s270 = smul.addr %s269, 8
        %s271 = scalar_lea.vmem [#allocation7], %s270
        %s272 = sand.u32 %s113, 1
        %s273 = scalar_lea.sflag [#allocation9], %s272
        %s274 = sand.u32 %s113, 1
        %s275 = smul.addr %s274, 8
        %s276 = scalar_lea.vmem [#allocation8], %s275
        // Predicated region
        $region37: #{tpu_custom_call.1} parent=27 // pred_check
          %p277 = pneg %p97
        $region38: #{tpu_custom_call.1} parent=27 // pred_check_branch
          %279 = sbr.rel (%p277) target = $region40
        $region39: #{tpu_custom_call.1} parent=27 // pred_region
          %s281 = ssub.s32 128, 128
          %282 = vsyncadd %s268, %s281
          %s283 = smul.addr %s27, 128
          %s284 = scalar_lea.hbm %s2, %s283
          %s286 = sshll.u32 %s271, 4
          %s287 = int_to_ptr.vmem [resolvable:$true] %s286
          %289 = dma.vmem_to_hbm [thread:$0]  %s287, 128, %s284, %s268
        $region40: #{tpu_custom_call.1} parent=27 // pred_fallthru
          _
        // Predicated region
        $region41: #{tpu_custom_call.1} parent=27 // pred_check
          %p290 = pneg %p123
        $region42: #{tpu_custom_call.1} parent=27 // pred_check_branch
          %292 = sbr.rel (%p290) target = $region44
        $region43: #{tpu_custom_call.1} parent=27 // pred_region
          %s294 = ssub.s32 128, 128
          %295 = vsyncadd %s273, %s294
          %s296 = smul.addr %s27, 128
          %s297 = scalar_lea.hbm %s3, %s296
          %s299 = sshll.u32 %s276, 4
          %s300 = int_to_ptr.vmem [resolvable:$true] %s299
          %302 = dma.vmem_to_hbm [thread:$0]  %s300, 128, %s297, %s273
        $region44: #{tpu_custom_call.1} parent=27 // pred_fallthru
          _
      $region28: #{tpu_custom_call.1} parent=5 // pred_fallthru
        _
      %p303 = scmp.le.s32.totalorder 2, %s22
      // Predicated region
      $region45: #{tpu_custom_call.1} parent=5 // pred_check
        %p304 = pneg %p303
      $region46: #{tpu_custom_call.1} parent=5 // pred_check_branch
        %306 = sbr.rel (%p304) target = $region48
      $region47: #{tpu_custom_call.1} parent=5 // pred_region
        %s307 = ssub.s32 %s22, 2
        // Predicated region
        $region49: #{tpu_custom_call.1} parent=47 // pred_check
          %p308 = pneg %p103
        $region50: #{tpu_custom_call.1} parent=47 // pred_check_branch
          %310 = sbr.rel (%p308) target = $region52
        $region51: #{tpu_custom_call.1} parent=47 // pred_region
          %s311 = sand.u32 %s88, 1
          %s312 = scalar_lea.sflag [#allocation4], %s311
          %s313 = sand.u32 %s88, 1
          %s314 = smul.addr %s313, 8
          %s315 = scalar_lea.vmem [#allocation7], %s314
          %316 = dma.done %s312, 128
        $region52: #{tpu_custom_call.1} parent=47 // pred_fallthru
          _
        // Predicated region
        $region53: #{tpu_custom_call.1} parent=47 // pred_check
          %p317 = pneg %p129
        $region54: #{tpu_custom_call.1} parent=47 // pred_check_branch
          %319 = sbr.rel (%p317) target = $region56
        $region55: #{tpu_custom_call.1} parent=47 // pred_region
          %s320 = sand.u32 %s114, 1
          %s321 = scalar_lea.sflag [#allocation9], %s320
          %s322 = sand.u32 %s114, 1
          %s323 = smul.addr %s322, 8
          %s324 = scalar_lea.vmem [#allocation8], %s323
          %325 = dma.done %s321, 128
        $region56: #{tpu_custom_call.1} parent=47 // pred_fallthru
          _
      $region48: #{tpu_custom_call.1} parent=5 // pred_fallthru
        _
    $region6: #{tpu_custom_call.1} parent=1 // loop_footer
      %s26 = sadd.s32 1, %s22
    $region7: #{tpu_custom_call.1} parent=1 // loop_footer_branch
      %21 = sbr.rel target = $region3
    $region8: #{tpu_custom_call.1} parent=1 // loop_exit
      _
    %326 = vsyncpa [#allocation3], 1
    %s327 = scalar_lea.sflag [#allocation3], 1
    %328 = vsyncpa %s327, 1
    %329 = vsyncpa [#allocation6], 1
    %s330 = scalar_lea.sflag [#allocation6], 1
    %331 = vsyncpa %s330, 1
    %332 = vsyncpa [#allocation4], 1
    %s333 = scalar_lea.sflag [#allocation4], 1
    %334 = vsyncpa %s333, 1
    %335 = vsyncpa [#allocation9], 1
    %s336 = scalar_lea.sflag [#allocation9], 1
    %337 = vsyncpa %s336, 1

</llo_original>
